<compile_context>
chip_gen: v7x
topology: tpu7x:2x2x1
jax: 0.10.0
libtpu: 0.0.40
codegen_flags: <defaults>
</compile_context>

<pallas_src>
from functools import partial

import jax
import jax.numpy as jnp
from jax.experimental import pallas as pl
from jax.experimental.pallas import tpu as pltpu

BN_EPS = 1e-5


def _round_up(v, m):
    return ((v + m - 1) // m) * m


def _pick_batch_block(batch, max_block=8):
    """Largest divisor of `batch` <= max_block.  If that leaves a single batch
    block and batch is even, halve it so the 'parallel' batch grid axis has at
    least two blocks (v7x has 2 TensorCores per chip)."""
    bblk = 1
    for d in range(1, min(batch, max_block) + 1):
        if batch % d == 0:
            bblk = d
    if batch > 1 and batch // bblk < 2 and batch % 2 == 0:
        bblk = batch // 2
    return bblk


def _vmem_budget_bytes():
    """Generation-aware VMEM budget: ~3/4 of physical VMEM, capped at 96 MiB.
    (v5e/v6e: 128 MiB -> 96 MiB budget; v7x: 64 MiB -> 48 MiB budget.)"""
    phys = 64 << 20  # conservative fallback (v7x-sized)
    try:
        phys = int(getattr(pltpu.get_tpu_info(), "vmem_capacity_bytes", phys))
    except Exception:
        pass
    return int(min(phys * 3 // 4, 96 << 20))


# -----------------------------------------------------------------------------
# Fused ODConv Attention kernel
# -----------------------------------------------------------------------------
def _accum_chunks(x_ref, acc_ref, n_full, rem):
    """acc_ref (Bblk, C_in, 128) += partial sums of x_ref over 128-lane chunks.

    Pure VPU adds on lane-aligned slabs (no cross-lane XLU work, no masked
    stores).  `n_full` full chunks plus an optional `rem`-lane masked chunk
    (only emitted for the statically-known tail of the last spatial tile)."""
    if n_full > 0:
        if n_full <= 16:  # short fixed trip count: unroll for LLO visibility
            for c in range(n_full):
                acc_ref[...] += x_ref[:, :, c * 128:(c + 1) * 128].astype(
                    jnp.float32)
        else:
            def body(c, carry):
                off = pl.multiple_of(c * 128, 128)
                acc_ref[...] += x_ref[:, :, pl.ds(off, 128)].astype(jnp.float32)
                return carry
            jax.lax.fori_loop(0, n_full, body, 0, unroll=4)
    if rem > 0:
        chunk = x_ref[:, :, n_full * 128:(n_full + 1) * 128].astype(jnp.float32)
        lane = jax.lax.broadcasted_iota(jnp.int32, chunk.shape, 2)
        # Mask BEFORE the add: block padding past H*W is unspecified.
        acc_ref[...] += jnp.where(lane < rem, chunk, 0.0)


def _attention_kernel(x_ref, wfc_ref, wheads_ref, bheads_ref, temp_ref,
                      out_ref, acc_ref, *, hw, tile, kn_start, kernel_num):
    """grid = (batch_blocks, num_spatial_tiles); the spatial axis is a
    reduction ("arbitrary"), the batch axis is "parallel"."""
    k = pl.program_id(1)
    last = pl.num_programs(1) - 1

    # ---- init the lane-dense pooling accumulator at the start of a row ------
    @pl.when(k == 0)
    def _init():
        acc_ref[...] = jnp.zeros_like(acc_ref)

    # ---- partial global-average-pool over this spatial tile -----------------
    tail = hw % tile
    if tail == 0:
        _accum_chunks(x_ref, acc_ref, tile // 128, 0)
    else:
        @pl.when(k < last)
        def _full_tiles():
            _accum_chunks(x_ref, acc_ref, tile // 128, 0)

        @pl.when(k == last)
        def _tail_tile():
            _accum_chunks(x_ref, acc_ref, tail // 128, tail % 128)

    # ---- last tile: fc -> ReLU -> fused heads (sigmoid + masked softmax) ----
    @pl.when(k == last)
    def _heads():
        # Single cross-lane (XLU) reduce per batch block, outside the stream.
        pooled = jnp.sum(acc_ref[...], axis=-1) * (1.0 / hw)   # (Bblk, C_in)
        hidden = jnp.maximum(
            jnp.dot(pooled, wfc_ref[...],
                    preferred_element_type=jnp.float32), 0.0)  # (Bblk, A)

        t = temp_ref[0]                                        # SMEM scalar
        z = (jnp.dot(hidden, wheads_ref[...],
                     preferred_element_type=jnp.float32)
             + bheads_ref[...]) / t                            # (Bblk, N_pad)

        sig = jax.nn.sigmoid(z)

        col = jax.lax.broadcasted_iota(jnp.int32, z.shape, 1)
        is_kn = (col >= kn_start) & (col < kn_start + kernel_num)
        m = jnp.max(jnp.where(is_kn, z, -jnp.inf), axis=-1, keepdims=True)
        e = jnp.exp(jnp.where(is_kn, z - m, -jnp.inf))
        soft = e / jnp.sum(e, axis=-1, keepdims=True)

        out_ref[...] = jnp.where(is_kn, soft, sig)[:, None, :].astype(
            out_ref.dtype)


def odconv_attention_forward(x, p, kernel_size, kernel_num, temperature=1.0,
                             spatial_tile=None, batch_block=None):
    """x: (B, C_in, H, W).  Returns (channel, filter, spatial, kernel)
    attentions shaped like the PyTorch module's `view` outputs."""
    B, C_in, H, W = x.shape
    hw = H * W
    A = p["w_fc"].shape[1]
    C_out = p["w_fil"].shape[1]
    kk = kernel_size * kernel_size

    # Pack the four 1x1 head convs into ONE lane-dense (A, N_pad) matmul.
    w_heads = jnp.concatenate([p["w_ch"], p["w_fil"], p["w_sp"], p["w_kn"]],
                              axis=1)
    b_heads = jnp.concatenate([p["b_ch"], p["b_fil"], p["b_sp"], p["b_kn"]],
                              axis=0)
    n_total = C_in + C_out + kk + kernel_num
    n_pad = _round_up(max(n_total, 128), 128)
    w_heads = jnp.pad(w_heads, ((0, 0), (0, n_pad - n_total)))
    b_heads = jnp.pad(b_heads, (0, n_pad - n_total)).reshape(1, n_pad)
    kn_start = C_in + C_out + kk

    bblk = batch_block if batch_block is not None else _pick_batch_block(B)
    assert B % bblk == 0, (B, bblk)

    # ---- generation-aware VMEM budget -> spatial tile ------------------------
    itemsize = x.dtype.itemsize
    budget = _vmem_budget_bytes()
    # Honest accounting: weights/bias/output blocks are double-buffered by the
    # pipeline even with constant index maps; the accumulator is resident.
    aux = 2 * 4 * (C_in * A + A * n_pad + n_pad)       # fc + heads + bias (f32)
    aux += 2 * 4 * bblk * n_pad                        # output blocks (f32)
    aux += 4 * bblk * C_in * 128                       # accumulator scratch
    headroom = 2 << 20
    x_budget = max(budget - aux - headroom, 2 * bblk * C_in * 128 * itemsize)
    max_tile = max(128, (x_budget // (2 * bblk * C_in * itemsize)) // 128 * 128)

    if spatial_tile is None:
        spatial_tile = max_tile
        # If H*W is a multiple of 128, prefer a tile that divides it exactly so
        # the masked-tail path vanishes.
        if hw % 128 == 0:
            t = min(max_tile, _round_up(hw, 128))
            while t > 128 and hw % t != 0:
                t -= 128
            spatial_tile = t
    # Caller-supplied tiles are clamped to the budget (never the VMEM limit).
    spatial_tile = int(min(_round_up(int(spatial_tile), 128), max_tile,
                           _round_up(hw, 128)))
    n_hw = pl.cdiv(hw, spatial_tile)

    x_dbl = 2 * bblk * C_in * spatial_tile * itemsize
    vmem_limit = int(min(max(x_dbl + aux + headroom, 32 << 20), budget))

    x_flat = x.reshape(B, C_in, hw)
    temp = jnp.asarray(temperature, jnp.float32).reshape(1)

    packed = pl.pallas_call(
        partial(_attention_kernel, hw=hw, tile=spatial_tile,
                kn_start=kn_start, kernel_num=kernel_num),
        out_shape=jax.ShapeDtypeStruct((B, 1, n_pad), jnp.float32),
        grid=(B // bblk, n_hw),
        in_specs=[
            pl.BlockSpec((bblk, C_in, spatial_tile), lambda b, k: (b, 0, k)),
            pl.BlockSpec((C_in, A), lambda b, k: (0, 0)),
            pl.BlockSpec((A, n_pad), lambda b, k: (0, 0)),
            pl.BlockSpec((1, n_pad), lambda b, k: (0, 0)),
            pl.BlockSpec(memory_space=pltpu.MemorySpace.SMEM),
        ],
        out_specs=pl.BlockSpec((bblk, 1, n_pad), lambda b, k: (b, 0, 0)),
        scratch_shapes=[pltpu.VMEM((bblk, C_in, 128), jnp.float32)],
        compiler_params=pltpu.CompilerParams(
            dimension_semantics=("parallel", "arbitrary"),
            vmem_limit_bytes=vmem_limit),
    )(x_flat, p["w_fc"], w_heads, b_heads, temp)

    packed = packed.reshape(B, n_pad)
    channel_attention = packed[:, :C_in].reshape(B, C_in, 1, 1)
    filter_attention = packed[:, C_in:C_in + C_out].reshape(B, C_out, 1, 1)
    spatial_attention = packed[:, C_in + C_out:kn_start].reshape(
        B, 1, 1, 1, kernel_size, kernel_size)
    kernel_attention = packed[:, kn_start:kn_start + kernel_num].reshape(
        B, kernel_num, 1, 1, 1, 1)
    return (channel_attention, filter_attention, spatial_attention,
            kernel_attention)


# -----------------------------------------------------------------------------
# Pure-JAX reference of the Attention forward (for verification)
# -----------------------------------------------------------------------------
def attention_reference(x, p, kernel_size, kernel_num, temperature=1.0):
    B, C_in = x.shape[0], x.shape[1]
    hp = jax.lax.Precision.HIGHEST
    pooled = jnp.mean(x.reshape(B, C_in, -1), axis=-1)
    hidden = jnp.maximum(jnp.dot(pooled, p["w_fc"], precision=hp), 0.0)
    ch = jax.nn.sigmoid(
        (jnp.dot(hidden, p["w_ch"], precision=hp) + p["b_ch"]) / temperature)
    fil = jax.nn.sigmoid(
        (jnp.dot(hidden, p["w_fil"], precision=hp) + p["b_fil"]) / temperature)
    sp = jax.nn.sigmoid(
        (jnp.dot(hidden, p["w_sp"], precision=hp) + p["b_sp"]) / temperature)
    kn = jax.nn.softmax(
        (jnp.dot(hidden, p["w_kn"], precision=hp) + p["b_kn"]) / temperature,
        axis=1)
    C_out = p["w_fil"].shape[1]
    return (ch.reshape(B, C_in, 1, 1),
            fil.reshape(B, C_out, 1, 1),
            sp.reshape(B, 1, 1, 1, kernel_size, kernel_size),
            kn.reshape(B, kernel_num, 1, 1, 1, 1))


# -----------------------------------------------------------------------------
# Bottleneck glue (Conv + ODConv2d), convolutions delegated to XLA
# -----------------------------------------------------------------------------
def _conv_bn_silu(x, w, bn):
    """Conv(k, s=1, autopad, no bias) + inference BatchNorm + SiLU.
    Default (fast MXU) precision per performance review."""
    kh, kw = w.shape[2], w.shape[3]
    y = jax.lax.conv_general_dilated(
        x, w, window_strides=(1, 1),
        padding=[(kh // 2, kh // 2), (kw // 2, kw // 2)],
        dimension_numbers=("NCHW", "OIHW", "NCHW"))
    gamma, beta, mean, var = bn
    scale = gamma * jax.lax.rsqrt(var + BN_EPS)
    y = (y - mean[None, :, None, None]) * scale[None, :, None, None] \
        + beta[None, :, None, None]
    return y * jax.nn.sigmoid(y)           # SiLU


def _odconv2d_forward(x, p, *, kernel_size, kernel_num, stride, padding,
                      dilation, groups, temperature, attention_fn,
                      attention_dtype=None):
    """ODConv2d._forward_impl_common."""
    B, Cin, H, W = x.shape
    Cout = p["weight"].shape[1]
    # Optionally stream x into the attention pool in bf16 (halves the HBM read
    # that dominates the attention kernel); kept None (f32) for tight parity.
    x_att = x.astype(attention_dtype) if attention_dtype is not None else x
    ch_att, fil_att, sp_att, kn_att = attention_fn(
        x_att, p["attention"], kernel_size, kernel_num, temperature)

    xw = (x * ch_att).reshape(1, B * Cin, H, W)
    agg = sp_att * kn_att * p["weight"][None]        # (B, kn, Cout, Cin/g, k, k)
    agg = jnp.sum(agg, axis=1).reshape(
        B * Cout, Cin // groups, kernel_size, kernel_size)
    out = jax.lax.conv_general_dilated(
        xw, agg, window_strides=(stride, stride),
        padding=[(padding, padding), (padding, padding)],
        rhs_dilation=(dilation, dilation),
        dimension_numbers=("NCHW", "OIHW", "NCHW"),
        feature_group_count=groups * B)
    out = out.reshape(B, Cout, out.shape[-2], out.shape[-1])
    return out * fil_att


def bottleneck_forward(x, params, *, shortcut=True, attention_fn):
    """Bottleneck: x + cv2(cv1(x))  (shortcut active when c1 == c2)."""
    c1 = x.shape[1]
    y = _conv_bn_silu(x, params["cv1_w"], params["cv1_bn"])
    y = _odconv2d_forward(
        y, params["cv2"], kernel_size=3, kernel_num=4, stride=1, padding=1,
        dilation=1, groups=1, temperature=params["temperature"],
        attention_fn=attention_fn)
    return x + y if (shortcut and c1 == y.shape[1]) else y


def _kaiming(key, shape, fan_out):
    return jax.random.normal(key, shape, jnp.float32) * (2.0 / fan_out) ** 0.5


if __name__ == "__main__":
    # Bottleneck(c1=16, c2=16, shortcut=True, e=0.5) -> hidden channels c_ = 8
    B, C1, H, W = 4, 16, 20, 20
    C2 = 16
    c_hidden = int(C2 * 0.5)
    kernel_size, kernel_num = 3, 4
    reduction, min_channel = 0.0625, 16
    A = max(int(c_hidden * reduction), min_channel)    # attention_channel = 16
    kk = kernel_size * kernel_size

    key = jax.random.PRNGKey(0)
    ks = jax.random.split(key, 12)
    x = jax.random.normal(ks[0], (B, C1, H, W), jnp.float32)

    # 1x1 conv weights stored transposed as (in, out) so the kernel computes
    # pooled @ W directly.  (PyTorch inits the biases to 0; we randomize them
    # to exercise the packed-bias path.)
    attn_params = {
        "w_fc": _kaiming(ks[1], (A, c_hidden), A).T,
        "w_ch": _kaiming(ks[2], (c_hidden, A), c_hidden).T,
        "b_ch": 0.1 * jax.random.normal(ks[3], (c_hidden,), jnp.float32),
        "w_fil": _kaiming(ks[4], (C2, A), C2).T,
        "b_fil": 0.1 * jax.random.normal(ks[5], (C2,), jnp.float32),
        "w_sp": _kaiming(ks[6], (kk, A), kk).T,
        "b_sp": 0.1 * jax.random.normal(ks[7], (kk,), jnp.float32),
        "w_kn": _kaiming(ks[8], (kernel_num, A), kernel_num).T,
        "b_kn": 0.1 * jax.random.normal(ks[9], (kernel_num,), jnp.float32),
    }
    params = {
        "cv1_w": _kaiming(ks[10], (c_hidden, C1, 3, 3), c_hidden * 9),
        "cv1_bn": (jnp.ones((c_hidden,), jnp.float32),
                   jnp.zeros((c_hidden,), jnp.float32),
                   jnp.zeros((c_hidden,), jnp.float32),
                   jnp.ones((c_hidden,), jnp.float32)),
        "cv2": {
            "attention": attn_params,
            "weight": _kaiming(ks[11], (kernel_num, C2, c_hidden, 3, 3),
                               C2 * 9),
        },
        # ODConv anneals temperature at runtime; it reaches the kernel as an
        # SMEM scalar so changing it does not recompile.
        "temperature": jnp.float32(2.0),
    }

    # spatial_tile=128 forces a multi-step reduction over H*W = 400 with a
    # masked tail tile, exercising the accumulator / pipelined grid path.
    attn_pallas = partial(odconv_attention_forward, spatial_tile=128)

    fwd_pallas = jax.jit(partial(bottleneck_forward, shortcut=True,
                                 attention_fn=attn_pallas))
    fwd_ref = jax.jit(partial(bottleneck_forward, shortcut=True,
                              attention_fn=attention_reference))

    out = jax.block_until_ready(fwd_pallas(x, params))
    ref = jax.block_until_ready(fwd_ref(x, params))

    # Direct checks of the fused attention kernel (batch-blocked; both the
    # multi-tile masked-tail path and the auto single-tile path).
    y1 = _conv_bn_silu(x, params["cv1_w"], params["cv1_bn"])
    ref_att = attention_reference(y1, attn_params, kernel_size, kernel_num,
                                  params["temperature"])
    for tile in (128, None):
        got_att = jax.block_until_ready(
            odconv_attention_forward(y1, attn_params, kernel_size, kernel_num,
                                     params["temperature"], spatial_tile=tile))
        for g, r in zip(got_att, ref_att):
            assert g.shape == r.shape, (g.shape, r.shape)
            assert jnp.allclose(g, r, atol=1e-5, rtol=1e-4), \
                float(jnp.max(jnp.abs(g - r)))

    assert out.shape == (B, C2, H, W), out.shape
    assert jnp.allclose(out, ref, atol=1e-4, rtol=1e-3), \
        float(jnp.max(jnp.abs(out - ref)))

    print("KERNEL_OK")
</pallas_src>

<mosaic_0001>
module attributes {stable_mosaic.version = 11 : i64} {
  func.func @_attention_kernel(%arg0: i32, %arg1: i32, %arg2: memref<2x8x128xf32, #tpu.memory_space<vmem>>, %arg3: memref<8x16xf32, #tpu.memory_space<vmem>>, %arg4: memref<16x128xf32, #tpu.memory_space<vmem>>, %arg5: memref<1x128xf32, #tpu.memory_space<vmem>>, %arg6: memref<1xf32, #tpu.memory_space<smem>>, %arg7: memref<2x1x128xf32, #tpu.memory_space<vmem>>, %arg8: memref<2x8x128xf32, #tpu.memory_space<vmem>>) attributes {dimension_semantics = [#tpu.dimension_semantics<parallel>, #tpu.dimension_semantics<arbitrary>], iteration_bounds = array<i64: 2, 4>, scalar_prefetch = 0 : i64, scratch_operands = 1 : i64, tpu.core_type = #tpu.core_type<tc>, window_params = [{transform_indices = @transform_0, window_bounds = array<i64: 2, 8, 128>}, {pipeline_mode = #tpu.pipeline_mode<synchronous>, transform_indices = @transform_1, window_bounds = array<i64: 8, 16>}, {pipeline_mode = #tpu.pipeline_mode<synchronous>, transform_indices = @transform_2, window_bounds = array<i64: 16, 128>}, {pipeline_mode = #tpu.pipeline_mode<synchronous>, transform_indices = @transform_3, window_bounds = array<i64: 1, 128>}, {transform_indices = @transform_4, window_bounds = array<i64: 1>}, {transform_indices = @transform_5, window_bounds = array<i64: 2, 1, 128>}]} {
    %c0_i32 = arith.constant 0 : i32
    %0 = arith.cmpi eq, %arg1, %c0_i32 : i32
    %1 = arith.extui %0 : i1 to i32
    %c0_i32_0 = arith.constant 0 : i32
    %2 = arith.cmpi ne, %1, %c0_i32_0 : i32
    scf.if %2 {
      %cst = arith.constant 0.000000e+00 : f32
      %12 = vector.broadcast %cst : f32 to vector<2x8x128xf32>
      %c0 = arith.constant 0 : index
      %c0_6 = arith.constant 0 : index
      %c0_7 = arith.constant 0 : index
      %13 = vector.load %arg8[%c0, %c0_6, %c0_7] : memref<2x8x128xf32, #tpu.memory_space<vmem>>, vector<2x8x128xf32>
      tpu.vector_store %arg8[%c0, %c0_6, %c0_7], %12 {strides = array<i32>} : memref<2x8x128xf32, #tpu.memory_space<vmem>>, vector<2x8x128xf32>,
    } else {
    }
    %c3_i32 = arith.constant 3 : i32
    %3 = arith.cmpi slt, %arg1, %c3_i32 : i32
    %4 = arith.extui %3 : i1 to i32
    %c0_i32_1 = arith.constant 0 : i32
    %5 = arith.cmpi ne, %4, %c0_i32_1 : i32
    scf.if %5 {
      %c0 = arith.constant 0 : index
      %c0_6 = arith.constant 0 : index
      %c0_7 = arith.constant 0 : index
      %12 = vector.load %arg8[%c0, %c0_6, %c0_7] : memref<2x8x128xf32, #tpu.memory_space<vmem>>, vector<2x8x128xf32>
      %c0_8 = arith.constant 0 : index
      %c0_9 = arith.constant 0 : index
      %c0_10 = arith.constant 0 : index
      %13 = vector.load %arg2[%c0_8, %c0_9, %c0_10] : memref<2x8x128xf32, #tpu.memory_space<vmem>>, vector<2x8x128xf32>
      %14 = arith.addf %12, %13 : vector<2x8x128xf32>
      %c0_11 = arith.constant 0 : index
      %c0_12 = arith.constant 0 : index
      %c0_13 = arith.constant 0 : index
      %15 = vector.load %arg8[%c0_11, %c0_12, %c0_13] : memref<2x8x128xf32, #tpu.memory_space<vmem>>, vector<2x8x128xf32>
      tpu.vector_store %arg8[%c0_11, %c0_12, %c0_13], %14 {strides = array<i32>} : memref<2x8x128xf32, #tpu.memory_space<vmem>>, vector<2x8x128xf32>,
    } else {
    }
    %c3_i32_2 = arith.constant 3 : i32
    %6 = arith.cmpi eq, %arg1, %c3_i32_2 : i32
    %7 = arith.extui %6 : i1 to i32
    %c0_i32_3 = arith.constant 0 : i32
    %8 = arith.cmpi ne, %7, %c0_i32_3 : i32
    scf.if %8 {
      %c0 = arith.constant 0 : index
      %c0_6 = arith.constant 0 : index
      %c0_7 = arith.constant 0 : index
      %12 = vector.load %arg2[%c0, %c0_6, %c0_7] : memref<2x8x128xf32, #tpu.memory_space<vmem>>, vector<2x8x128xf32>
      %13 = tpu.iota {dimensions = array<i32: 2>} : vector<2x8x128xi32>
      %c0_8 = arith.constant 0 : index
      %c0_9 = arith.constant 0 : index
      %c0_10 = arith.constant 0 : index
      %14 = vector.load %arg8[%c0_8, %c0_9, %c0_10] : memref<2x8x128xf32, #tpu.memory_space<vmem>>, vector<2x8x128xf32>
      %c16_i32 = arith.constant 16 : i32
      %15 = vector.broadcast %c16_i32 : i32 to vector<2x8x128xi32>
      %16 = arith.cmpi slt, %13, %15 : vector<2x8x128xi32>
      %cst = arith.constant 0.000000e+00 : f32
      %17 = vector.broadcast %cst : f32 to vector<2x8x128xf32>
      %18 = arith.select %16, %12, %17 : vector<2x8x128xi1>, vector<2x8x128xf32>
      %19 = arith.addf %14, %18 : vector<2x8x128xf32>
      %c0_11 = arith.constant 0 : index
      %c0_12 = arith.constant 0 : index
      %c0_13 = arith.constant 0 : index
      %20 = vector.load %arg8[%c0_11, %c0_12, %c0_13] : memref<2x8x128xf32, #tpu.memory_space<vmem>>, vector<2x8x128xf32>
      tpu.vector_store %arg8[%c0_11, %c0_12, %c0_13], %19 {strides = array<i32>} : memref<2x8x128xf32, #tpu.memory_space<vmem>>, vector<2x8x128xf32>,
    } else {
    }
    %c3_i32_4 = arith.constant 3 : i32
    %9 = arith.cmpi eq, %arg1, %c3_i32_4 : i32
    %10 = arith.extui %9 : i1 to i32
    %c0_i32_5 = arith.constant 0 : i32
    %11 = arith.cmpi ne, %10, %c0_i32_5 : i32
    scf.if %11 {
      %c0 = arith.constant 0 : index
      %c0_6 = arith.constant 0 : index
      %c0_7 = arith.constant 0 : index
      %12 = vector.load %arg8[%c0, %c0_6, %c0_7] : memref<2x8x128xf32, #tpu.memory_space<vmem>>, vector<2x8x128xf32>
      %cst = arith.constant dense<0.000000e+00> : vector<2x8xf32>
      %13 = vector.multi_reduction <add>, %12, %cst [2] : vector<2x8x128xf32> to vector<2x8xf32>
      %cst_8 = arith.constant 2.500000e-03 : f32
      %14 = vector.broadcast %cst_8 : f32 to vector<2x8xf32>
      %15 = arith.mulf %13, %14 : vector<2x8xf32>
      %c0_9 = arith.constant 0 : index
      %c0_10 = arith.constant 0 : index
      %16 = vector.load %arg3[%c0_9, %c0_10] : memref<8x16xf32, #tpu.memory_space<vmem>>, vector<8x16xf32>
      %cst_11 = arith.constant dense<0.000000e+00> : vector<2x16xf32>
      %17 = tpu.matmul %15, %16, %cst_11 {dimension_numbers = #tpu.dot_dimension_numbers<[1], [0], [0], [1], [0, 0, 1, 1], [], []>} : vector<2x8xf32>, vector<8x16xf32>, vector<2x16xf32> -> vector<2x16xf32>
      %cst_12 = arith.constant 0.000000e+00 : f32
      %18 = vector.broadcast %cst_12 : f32 to vector<2x16xf32>
      %19 = arith.maximumf %17, %18 : vector<2x16xf32>
      %c0_13 = arith.constant 0 : index
      %20 = memref.load %arg6[%c0_13] : memref<1xf32, #tpu.memory_space<smem>>
      %c0_14 = arith.constant 0 : index
      %c0_15 = arith.constant 0 : index
      %21 = vector.load %arg4[%c0_14, %c0_15] : memref<16x128xf32, #tpu.memory_space<vmem>>, vector<16x128xf32>
      %cst_16 = arith.constant dense<0.000000e+00> : vector<2x128xf32>
      %22 = tpu.matmul %19, %21, %cst_16 {dimension_numbers = #tpu.dot_dimension_numbers<[1], [0], [0], [1], [0, 0, 1, 1], [], []>} : vector<2x16xf32>, vector<16x128xf32>, vector<2x128xf32> -> vector<2x128xf32>
      %c0_17 = arith.constant 0 : index
      %c0_18 = arith.constant 0 : index
      %23 = vector.load %arg5[%c0_17, %c0_18] : memref<1x128xf32, #tpu.memory_space<vmem>>, vector<1x128xf32>
      %24 = vector.broadcast %23 : vector<1x128xf32> to vector<2x128xf32>
      %25 = arith.addf %22, %24 : vector<2x128xf32>
      %26 = vector.broadcast %20 : f32 to vector<2x128xf32>
      %27 = arith.divf %25, %26 : vector<2x128xf32>
      %28 = arith.negf %27 : vector<2x128xf32>
      %29 = math.exp %28 : vector<2x128xf32>
      %cst_19 = arith.constant 1.000000e+00 : f32
      %30 = vector.broadcast %cst_19 : f32 to vector<2x128xf32>
      %31 = arith.addf %30, %29 : vector<2x128xf32>
      %32 = arith.divf %30, %31 : vector<2x128xf32>
      %33 = tpu.iota {dimensions = array<i32: 1>} : vector<2x128xi32>
      %c33_i32 = arith.constant 33 : i32
      %34 = vector.broadcast %c33_i32 : i32 to vector<2x128xi32>
      %35 = arith.cmpi sge, %33, %34 : vector<2x128xi32>
      %c37_i32 = arith.constant 37 : i32
      %36 = vector.broadcast %c37_i32 : i32 to vector<2x128xi32>
      %37 = arith.cmpi slt, %33, %36 : vector<2x128xi32>
      %38 = arith.andi %35, %37 : vector<2x128xi1>
      %cst_20 = arith.constant 0xFF800000 : f32
      %39 = vector.broadcast %cst_20 : f32 to vector<2x128xf32>
      %40 = arith.select %38, %27, %39 : vector<2x128xi1>, vector<2x128xf32>
      %cst_21 = arith.constant dense<0xFF800000> : vector<2xf32>
      %41 = vector.multi_reduction <maximumf>, %40, %cst_21 [1] : vector<2x128xf32> to vector<2xf32>
      %42 = vector.shape_cast %41 : vector<2xf32> to vector<2x1xf32>
      %43 = vector.broadcast %42 : vector<2x1xf32> to vector<2x128xf32>
      %44 = arith.subf %27, %43 : vector<2x128xf32>
      %cst_22 = arith.constant 0xFF800000 : f32
      %45 = vector.broadcast %cst_22 : f32 to vector<2x128xf32>
      %46 = arith.select %38, %44, %45 : vector<2x128xi1>, vector<2x128xf32>
      %47 = math.exp %46 : vector<2x128xf32>
      %cst_23 = arith.constant dense<0.000000e+00> : vector<2xf32>
      %48 = vector.multi_reduction <add>, %47, %cst_23 [1] : vector<2x128xf32> to vector<2xf32>
      %49 = vector.shape_cast %48 : vector<2xf32> to vector<2x1xf32>
      %50 = vector.broadcast %49 : vector<2x1xf32> to vector<2x128xf32>
      %51 = arith.divf %47, %50 : vector<2x128xf32>
      %52 = arith.select %38, %51, %32 : vector<2x128xi1>, vector<2x128xf32>
      %53 = vector.shape_cast %52 : vector<2x128xf32> to vector<2x1x128xf32>
      %c0_24 = arith.constant 0 : index
      %c0_25 = arith.constant 0 : index
      %c0_26 = arith.constant 0 : index
      %54 = vector.load %arg7[%c0_24, %c0_25, %c0_26] : memref<2x1x128xf32, #tpu.memory_space<vmem>>, vector<2x1x128xf32>
      tpu.vector_store %arg7[%c0_24, %c0_25, %c0_26], %53 {strides = array<i32>} : memref<2x1x128xf32, #tpu.memory_space<vmem>>, vector<2x1x128xf32>,
    } else {
    }
    return
  }
  func.func @transform_0(%arg0: i32, %arg1: i32) -> (i32, i32, i32) {
    %c0_i32 = arith.constant 0 : i32
    %c0_i32_0 = arith.constant 0 : i32
    return %arg0, %c0_i32, %arg1 : i32, i32, i32
  }
  func.func @transform_1(%arg0: i32, %arg1: i32) -> (i32, i32) {
    %c0_i32 = arith.constant 0 : i32
    %c0_i32_0 = arith.constant 0 : i32
    %c0_i32_1 = arith.constant 0 : i32
    return %c0_i32, %c0_i32_0 : i32, i32
  }
  func.func @transform_2(%arg0: i32, %arg1: i32) -> (i32, i32) {
    %c0_i32 = arith.constant 0 : i32
    %c0_i32_0 = arith.constant 0 : i32
    %c0_i32_1 = arith.constant 0 : i32
    return %c0_i32, %c0_i32_0 : i32, i32
  }
  func.func @transform_3(%arg0: i32, %arg1: i32) -> (i32, i32) {
    %c0_i32 = arith.constant 0 : i32
    %c0_i32_0 = arith.constant 0 : i32
    %c0_i32_1 = arith.constant 0 : i32
    return %c0_i32, %c0_i32_0 : i32, i32
  }
  func.func @transform_4(%arg0: i32, %arg1: i32) -> i32 {
    %c0_i32 = arith.constant 0 : i32
    %c0_i32_0 = arith.constant 0 : i32
    return %c0_i32 : i32
  }
  func.func @transform_5(%arg0: i32, %arg1: i32) -> (i32, i32, i32) {
    %c0_i32 = arith.constant 0 : i32
    %c0_i32_0 = arith.constant 0 : i32
    %c0_i32_1 = arith.constant 0 : i32
    return %arg0, %c0_i32, %c0_i32_0 : i32, i32, i32
  }
}

</mosaic_0001>

<llo_original>
// kernel: bottleneck_forward.1
$region0: #{bottleneck_forward.1}
  #allocation0 [shape = 'u32[]', space=smem, size = 0x4, offset = 0x4, fixed_abs, tag = 'smem constant byte address 0x4 - core index']
  #allocation1 [shape = 'u32[144,128]{1,0:T(1,128)}', space=vmem, size = 0x12000, scoped, tag = 'internal scratch']
  #allocation2 [shape = 'f32[2,8,128]{2,1,0:T(8,128)}', space=vmem, size = 0x2000, scoped, tag = 'scratch operand']
  #allocation3 [shape = 'f32[1]{0:T(128)S(6)}', space=smem, size = 0x200, scoped, tag = 'scoped memory for bottleneck_forward.1']
  %s0 = inlined_call_operand.vmem [shape: f32[4,8,400], index: 0, kind: input, shape index: {}]
  %s1 = inlined_call_operand.vmem [shape: f32[8,16], index: 1, kind: input, shape index: {}]
  %s2 = inlined_call_operand.vmem [shape: f32[16,128], index: 2, kind: input, shape index: {}]
  %s3 = inlined_call_operand.vmem [shape: f32[1,128], index: 3, kind: input, shape index: {}]
  %s4 = inlined_call_operand.<no memory space> [shape: f32[1], index: 4, kind: input, shape index: {}]
  %s5 = inlined_call_operand.vmem [shape: f32[4,1,128], index: 5, kind: output, shape index: {}]
  %s6 = sld [smem:[#allocation0]]
  $region103: #{bottleneck_forward.1} parent=0
    _
  %s8 = ssub.s32 1, %s6
  %s9 = scalar_select 0, %s8, %s6
  %10 = sst [smem:[#allocation3]] %s4
  $region1: #{bottleneck_forward.1} parent=0
    #allocation4 [shape = 'u8[16384]{0}', space=vmem, size = 0x4000, scoped, tag = 'input window, operand 0']
    loop: start=0, step=1, limit=10
    $region2: #{bottleneck_forward.1} parent=1 // loop_pre_header
      _
    $region3: #{bottleneck_forward.1} parent=1 // loop_header
      %s12 = sphi 0, %s16
      %p13 = scmp.ge.s32.totalorder %s12, 10
      %s19 = sphi 0, %s31
      %s20 = sphi 0, %s27
      %s21 = sphi 0, %s19
      %s22 = sphi 0, %s20
      %s23 = sphi 0, %s21
      %s24 = sphi 0, %s22
      %s36 = sphi 0, %s38
      %s39 = sphi 0, %s36
      %s40 = sphi 0, %s39
      %s56 = sphi 0, %s40
      %s60 = sphi 0, %s60
      %s62 = sphi 0, %s60
      %s63 = sphi 0, %s62
      %s77 = sphi 0, %s63
      %s81 = sphi 0, %s81
      %s83 = sphi 0, %s81
      %s84 = sphi 0, %s83
      %s98 = sphi 0, %s84
      %s102 = sphi 0, %s102
      %s104 = sphi 0, %s102
      %s105 = sphi 0, %s104
      %s119 = sphi 0, %s105
      %s123 = sphi 0, %s123
      %s125 = sphi 0, %s123
      %s126 = sphi 0, %s125
      %s140 = sphi 0, %s126
      %s146 = sphi 0, %s148
      %s149 = sphi 0, %s146
      %s150 = sphi 0, %s149
      %s166 = sphi 0, %s150
    $region4: #{bottleneck_forward.1} parent=1 // loop_header_branch
      %15 = sbr.rel (%p13) target = $region8
    $region5: #{bottleneck_forward.1} parent=1 // loop_body
      %s17 = ssub.s32 %s12, 1
      %s18 = ssub.s32 %s12, 2
      %s25 = sadd.s32 1, %s20
      %p26 = scmp.ge.s32.totalorder %s25, 4
      %s27 = scalar_select %p26, 0, %s25
      %s28 = sadd.s32 1, %s19
      %s29 = scalar_select %p26, %s28, %s19
      %p30 = scmp.ge.s32.totalorder %s29, 2
      %s31 = scalar_select %p30, 0, %s29
      %s32 = ssub.s32 %s19, %s31
      %s33 = ssub.s32 %s20, %s27
      %s34 = sor.u32 %s32, %s33
      %p35 = scmp.eq.s32.totalorder %s34, 0
      %s37 = sadd.s32 %s36, 1
      %s38 = scalar_select %p35, %s36, %s37
      %p41 = pneg %p35
      %p42 = scmp.eq.s32.totalorder %s12, 7
      %p43 = por %p41, %p42
      %p44 = scmp.ne.s32.totalorder %s36, %s39
      %p45 = scmp.eq.s32.totalorder %s12, 0
      %p46 = por %p44, %p45
      %p47 = scmp.ne.s32.totalorder %s36, %s39
      %p48 = scmp.eq.s32.totalorder %s17, 7
      %p49 = por %p47, %p48
      %p50 = scmp.ne.s32.totalorder %s39, %s40
      %p51 = scmp.eq.s32.totalorder %s17, 0
      %p52 = por %p50, %p51
      %p53 = scmp.ne.s32.totalorder %s39, %s40
      %p54 = scmp.eq.s32.totalorder %s18, 7
      %p55 = por %p53, %p54
      %p57 = scmp.ne.s32.totalorder %s40, %s56
      %p58 = scmp.eq.s32.totalorder %s18, 0
      %p59 = por %p57, %p58
      %s61 = sadd.s32 %s60, 1
      %p64 = scmp.eq.s32.totalorder %s12, 7
      %p65 = scmp.ne.s32.totalorder %s60, %s62
      %p66 = scmp.eq.s32.totalorder %s12, 0
      %p67 = por %p65, %p66
      %p68 = scmp.ne.s32.totalorder %s60, %s62
      %p69 = scmp.eq.s32.totalorder %s17, 7
      %p70 = por %p68, %p69
      %p71 = scmp.ne.s32.totalorder %s62, %s63
      %p72 = scmp.eq.s32.totalorder %s17, 0
      %p73 = por %p71, %p72
      %p74 = scmp.ne.s32.totalorder %s62, %s63
      %p75 = scmp.eq.s32.totalorder %s18, 7
      %p76 = por %p74, %p75
      %p78 = scmp.ne.s32.totalorder %s63, %s77
      %p79 = scmp.eq.s32.totalorder %s18, 0
      %p80 = por %p78, %p79
      %s82 = sadd.s32 %s81, 1
      %p85 = scmp.eq.s32.totalorder %s12, 7
      %p86 = scmp.ne.s32.totalorder %s81, %s83
      %p87 = scmp.eq.s32.totalorder %s12, 0
      %p88 = por %p86, %p87
      %p89 = scmp.ne.s32.totalorder %s81, %s83
      %p90 = scmp.eq.s32.totalorder %s17, 7
      %p91 = por %p89, %p90
      %p92 = scmp.ne.s32.totalorder %s83, %s84
      %p93 = scmp.eq.s32.totalorder %s17, 0
      %p94 = por %p92, %p93
      %p95 = scmp.ne.s32.totalorder %s83, %s84
      %p96 = scmp.eq.s32.totalorder %s18, 7
      %p97 = por %p95, %p96
      %p99 = scmp.ne.s32.totalorder %s84, %s98
      %p100 = scmp.eq.s32.totalorder %s18, 0
      %p101 = por %p99, %p100
      %s103 = sadd.s32 %s102, 1
      %p106 = scmp.eq.s32.totalorder %s12, 7
      %p107 = scmp.ne.s32.totalorder %s102, %s104
      %p108 = scmp.eq.s32.totalorder %s12, 0
      %p109 = por %p107, %p108
      %p110 = scmp.ne.s32.totalorder %s102, %s104
      %p111 = scmp.eq.s32.totalorder %s17, 7
      %p112 = por %p110, %p111
      %p113 = scmp.ne.s32.totalorder %s104, %s105
      %p114 = scmp.eq.s32.totalorder %s17, 0
      %p115 = por %p113, %p114
      %p116 = scmp.ne.s32.totalorder %s104, %s105
      %p117 = scmp.eq.s32.totalorder %s18, 7
      %p118 = por %p116, %p117
      %p120 = scmp.ne.s32.totalorder %s105, %s119
      %p121 = scmp.eq.s32.totalorder %s18, 0
      %p122 = por %p120, %p121
      %s124 = sadd.s32 %s123, 1
      %p127 = scmp.eq.s32.totalorder %s12, 7
      %p128 = scmp.ne.s32.totalorder %s123, %s125
      %p129 = scmp.eq.s32.totalorder %s12, 0
      %p130 = por %p128, %p129
      %p131 = scmp.ne.s32.totalorder %s123, %s125
      %p132 = scmp.eq.s32.totalorder %s17, 7
      %p133 = por %p131, %p132
      %p134 = scmp.ne.s32.totalorder %s125, %s126
      %p135 = scmp.eq.s32.totalorder %s17, 0
      %p136 = por %p134, %p135
      %p137 = scmp.ne.s32.totalorder %s125, %s126
      %p138 = scmp.eq.s32.totalorder %s18, 7
      %p139 = por %p137, %p138
      %p141 = scmp.ne.s32.totalorder %s126, %s140
      %p142 = scmp.eq.s32.totalorder %s18, 0
      %p143 = por %p141, %p142
      %s144 = ssub.s32 %s19, %s31
      %p145 = scmp.eq.s32.totalorder %s144, 0
      %s147 = sadd.s32 %s146, 1
      %s148 = scalar_select %p145, %s146, %s147
      %p151 = pneg %p145
      %p152 = scmp.eq.s32.totalorder %s12, 7
      %p153 = por %p151, %p152
      %p154 = scmp.ne.s32.totalorder %s146, %s149
      %p155 = scmp.eq.s32.totalorder %s12, 0
      %p156 = por %p154, %p155
      %p157 = scmp.ne.s32.totalorder %s146, %s149
      %p158 = scmp.eq.s32.totalorder %s17, 7
      %p159 = por %p157, %p158
      %p160 = scmp.ne.s32.totalorder %s149, %s150
      %p161 = scmp.eq.s32.totalorder %s17, 0
      %p162 = por %p160, %p161
      %p163 = scmp.ne.s32.totalorder %s149, %s150
      %p164 = scmp.eq.s32.totalorder %s18, 7
      %p165 = por %p163, %p164
      %p167 = scmp.ne.s32.totalorder %s150, %s166
      %p168 = scmp.eq.s32.totalorder %s18, 0
      %p169 = por %p167, %p168
      %p170 = scmp.le.s32.totalorder 1, %s12
      %p171 = scmp.lt.s32.totalorder %s12, 9
      %p172 = pnand %p170, %p171
      %p173 = pneg %p172
      // Predicated region
      $region9: #{bottleneck_forward.1} parent=5 // pred_check
        _
      $region10: #{bottleneck_forward.1} parent=5 // pred_check_branch
        %175 = sbr.rel (%p172) target = $region12
      $region11: #{bottleneck_forward.1} parent=5 // pred_region
        %s176 = ssub.s32 %s12, 1
        // Predicated region
        $region13: #{bottleneck_forward.1} parent=11 // pred_check
          %p177 = pneg %p73
        $region14: #{bottleneck_forward.1} parent=11 // pred_check_branch
          %179 = sbr.rel (%p177) target = $region16
        $region15: #{bottleneck_forward.1} parent=11 // pred_region
          _
        $region16: #{bottleneck_forward.1} parent=11 // pred_fallthru
          _
        // Predicated region
        $region17: #{bottleneck_forward.1} parent=11 // pred_check
          %p180 = pneg %p94
        $region18: #{bottleneck_forward.1} parent=11 // pred_check_branch
          %182 = sbr.rel (%p180) target = $region20
        $region19: #{bottleneck_forward.1} parent=11 // pred_region
          _
        $region20: #{bottleneck_forward.1} parent=11 // pred_fallthru
          _
        // Predicated region
        $region21: #{bottleneck_forward.1} parent=11 // pred_check
          %p183 = pneg %p115
        $region22: #{bottleneck_forward.1} parent=11 // pred_check_branch
          %185 = sbr.rel (%p183) target = $region24
        $region23: #{bottleneck_forward.1} parent=11 // pred_region
          _
        $region24: #{bottleneck_forward.1} parent=11 // pred_fallthru
          _
        // Predicated region
        $region25: #{bottleneck_forward.1} parent=11 // pred_check
          %p186 = pneg %p136
        $region26: #{bottleneck_forward.1} parent=11 // pred_check_branch
          %188 = sbr.rel (%p186) target = $region28
        $region27: #{bottleneck_forward.1} parent=11 // pred_region
          _
        $region28: #{bottleneck_forward.1} parent=11 // pred_fallthru
          _
      $region12: #{bottleneck_forward.1} parent=5 // pred_fallthru
        _
      %p189 = scmp.lt.s32.totalorder %s12, 8
      // Predicated region
      $region29: #{bottleneck_forward.1} parent=5 // pred_check
        %p190 = pneg %p189
      $region30: #{bottleneck_forward.1} parent=5 // pred_check_branch
        %192 = sbr.rel (%p190) target = $region32
      $region31: #{bottleneck_forward.1} parent=5 // pred_region
        // Predicated region
        $region33: #{bottleneck_forward.1} parent=31 // pred_check
          %p193 = pneg %p46
        $region34: #{bottleneck_forward.1} parent=31 // pred_check_branch
          %195 = sbr.rel (%p193) target = $region36
        $region35: #{bottleneck_forward.1} parent=31 // pred_region
          %s196 = sand.u32 %s36, 1
          %s197 = sand.u32 %s36, 1
          %s198 = smul.addr %s197, 16
          %s199 = scalar_lea.vmem [#allocation4], %s198
          %s200 = smul.u32 2, %s19
          %s201 = smul.addr %s200, 4
          %s202 = sadd.s32 %s20, %s201
          %s203 = smul.addr %s202, 8
          %s204 = scalar_lea.vmem %s0, %s203
          // Predicated region
          $region37: #{bottleneck_forward.1} parent=35 // pred_check
            _
          $region38: #{bottleneck_forward.1} parent=35 // pred_check_branch
            %206 = sbr.rel (0) target = $region40
          $region39: #{bottleneck_forward.1} parent=35 // pred_region
            // Predicated region
            $region41: #{bottleneck_forward.1} parent=39 // pred_check
              _
            $region42: #{bottleneck_forward.1} parent=39 // pred_check_branch
              %208 = sbr.rel (0) target = $region44
            $region43: #{bottleneck_forward.1} parent=39 // pred_region
              // Predicated region
              $region56: #{bottleneck_forward.1} parent=43 // pred_check
                _
              $region57: #{bottleneck_forward.1} parent=43 // pred_check_branch
                %225 = sbr.rel (0) target = $region59
              $region58: #{bottleneck_forward.1} parent=43 // pred_region
                loop: start=0, step=1, limit=1
                $region60: #{bottleneck_forward.1} parent=58 // loop_pre_header
                  _
                $region61: #{bottleneck_forward.1} parent=58 // loop_header
                  %s227 = sphi 0, %s231
                  %p228 = scmp.ge.s32.totalorder %s227, 1
                  %s232 = sphi %s204, %s204
                  %s233 = sphi %s199, %s199
                $region62: #{bottleneck_forward.1} parent=58 // loop_header_branch
                  %230 = sbr.rel (%p228) target = $region66
                $region63: #{bottleneck_forward.1} parent=58 // loop_body
                  %v234 = vld [vmem:[%s232] sm:$0xff]
                  %235 = vst [vmem:[%s233] sm:$0xff] %v234
                  %v236 = vld [vmem:[%s232 + $0x20] sm:$0xff]
                  %237 = vst [vmem:[%s233 + $0x8] sm:$0xff] %v236
                $region64: #{bottleneck_forward.1} parent=58 // loop_footer
                  %s231 = sadd.s32 1, %s227
                $region65: #{bottleneck_forward.1} parent=58 // loop_footer_branch
                  %226 = sbr.rel target = $region61
                $region66: #{bottleneck_forward.1} parent=58 // loop_exit
                  _
              $region59: #{bottleneck_forward.1} parent=43 // pred_fallthru
                _
              // Predicated region
              $region67: #{bottleneck_forward.1} parent=43 // pred_check
                _
              $region68: #{bottleneck_forward.1} parent=43 // pred_check_branch
                %239 = sbr.rel target = $region70
              $region69: #{bottleneck_forward.1} parent=43 // pred_region
                _
              $region70: #{bottleneck_forward.1} parent=43 // pred_fallthru
                _
            $region44: #{bottleneck_forward.1} parent=39 // pred_fallthru
              _
            // Predicated region
            $region45: #{bottleneck_forward.1} parent=39 // pred_check
              _
            $region46: #{bottleneck_forward.1} parent=39 // pred_check_branch
              %210 = sbr.rel target = $region48
            $region47: #{bottleneck_forward.1} parent=39 // pred_region
              loop: start=0, step=1, limit=1
              $region49: #{bottleneck_forward.1} parent=47 // loop_pre_header
                _
              $region50: #{bottleneck_forward.1} parent=47 // loop_header
                %s213 = sphi 0, %s217
                %p214 = scmp.ge.s32.totalorder %s213, 1
                %s218 = sphi %s204, %s204
                %s219 = sphi %s199, %s199
              $region51: #{bottleneck_forward.1} parent=47 // loop_header_branch
                %216 = sbr.rel (%p214) target = $region55
              $region52: #{bottleneck_forward.1} parent=47 // loop_body
                %v220 = vld [vmem:[%s218] sm:$0xff]
                %221 = vst [vmem:[%s219] sm:$0xff] %v220
                %v222 = vld [vmem:[%s218 + $0x20] sm:$0xff]
                %223 = vst [vmem:[%s219 + $0x8] sm:$0xff] %v222
              $region53: #{bottleneck_forward.1} parent=47 // loop_footer
                %s217 = sadd.s32 1, %s213
              $region54: #{bottleneck_forward.1} parent=47 // loop_footer_branch
                %212 = sbr.rel target = $region50
              $region55: #{bottleneck_forward.1} parent=47 // loop_exit
                _
            $region48: #{bottleneck_forward.1} parent=39 // pred_fallthru
              _
          $region40: #{bottleneck_forward.1} parent=35 // pred_fallthru
            _
          %240 = vnop
        $region36: #{bottleneck_forward.1} parent=31 // pred_fallthru
          _
      $region32: #{bottleneck_forward.1} parent=5 // pred_fallthru
        _
      %p241 = scmp.le.s32.totalorder 1, %s12
      %p242 = scmp.lt.s32.totalorder %s12, 9
      %p243 = pnand %p241, %p242
      %p244 = pneg %p243
      // Predicated region
      $region71: #{bottleneck_forward.1} parent=5 // pred_check
        _
      $region72: #{bottleneck_forward.1} parent=5 // pred_check_branch
        %246 = sbr.rel (%p243) target = $region74
      $region73: #{bottleneck_forward.1} parent=5 // pred_region
        %s247 = ssub.s32 %s12, 1
        %s248 = sand.u32 %s39, 1
        %s249 = sand.u32 %s39, 1
        %s250 = smul.addr %s249, 16
        %s251 = scalar_lea.vmem [#allocation4], %s250
        // Predicated region
        $region75: #{bottleneck_forward.1} parent=73 // pred_check
          %p252 = pneg %p52
        $region76: #{bottleneck_forward.1} parent=73 // pred_check_branch
          %254 = sbr.rel (%p252) target = $region78
        $region77: #{bottleneck_forward.1} parent=73 // pred_region
          _
        $region78: #{bottleneck_forward.1} parent=73 // pred_fallthru
          _
        %s255 = sand.u32 %s39, 1
        %s256 = sand.u32 %s39, 1
        %s257 = smul.addr %s256, 16
        %s258 = scalar_lea.vmem [#allocation4], %s257
        %p259 = pneg %p52
        %p260 = pneg %p49
        %p261 = pneg %p73
        %p262 = pneg %p70
        %p263 = pneg %p94
        %p264 = pneg %p91
        %p265 = pneg %p115
        %p266 = pneg %p112
        %p267 = pneg %p136
        %p268 = pneg %p133
        %p269 = pneg %p162
        %p270 = pneg %p159
        %s271 = smul.u32 2, %s21
        %p272 = scmp.lt.s32.totalorder %s271, 3
        %s273 = scalar_select %p272, %s271, 3
        %s274 = scalar_lea.vmem %s5, %s273
        %s275 = smul.u32 2, %s21
        %s276 = smul.u32 2, %s21
        %p277 = scmp.lt.s32.totalorder %s276, 3
        %s278 = scalar_select %p277, %s276, 3
        %s279 = scalar_lea.vmem %s5, %s278
        %s280 = smul.u32 2, %s21
        %p281 = scmp.eq.s32.totalorder %s22, 0
        // Predicated region
        $region79: #{bottleneck_forward.1} parent=73 // pred_check
          %p282 = pneg %p281
        $region80: #{bottleneck_forward.1} parent=73 // pred_check_branch
          %284 = sbr.rel (%p282) target = $region82
        $region81: #{bottleneck_forward.1} parent=73 // pred_region
          %285 = vst [vmem:[#allocation2] sm:$0xff] 0.0
          %286 = vst [vmem:[#allocation2 + $0x8] sm:$0xff] 0.0
        $region82: #{bottleneck_forward.1} parent=73 // pred_fallthru
          _
        %p287 = scmp.lt.s32.totalorder %s22, 3
        // Predicated region
        $region83: #{bottleneck_forward.1} parent=73 // pred_check
          %p288 = pneg %p287
        $region84: #{bottleneck_forward.1} parent=73 // pred_check_branch
          %290 = sbr.rel (%p288) target = $region86
        $region85: #{bottleneck_forward.1} parent=73 // pred_region
          %v291 = vld [vmem:[#allocation2] sm:$0xff]
          %v292 = vld [vmem:[#allocation2 + $0x8] sm:$0xff]
          %v293 = vld [vmem:[%s251] sm:$0xff]
          %v294 = vld [vmem:[%s251 + $0x8] sm:$0xff]
          %v295 = vadd.f32 %v291, %v293
          %v296 = vadd.f32 %v292, %v294
          %297 = vst [vmem:[#allocation2] sm:$0xff] %v295
          %298 = vst [vmem:[#allocation2 + $0x8] sm:$0xff] %v296
        $region86: #{bottleneck_forward.1} parent=73 // pred_fallthru
          _
        %p299 = scmp.eq.s32.totalorder %s22, 3
        // Predicated region
        $region87: #{bottleneck_forward.1} parent=73 // pred_check
          %p300 = pneg %p299
        $region88: #{bottleneck_forward.1} parent=73 // pred_check_branch
          %302 = sbr.rel (%p300) target = $region90
        $region89: #{bottleneck_forward.1} parent=73 // pred_region
          %v303 = vld [vmem:[%s251] sm:$0xff]
          %v304 = vld [vmem:[%s251 + $0x8] sm:$0xff]
          %v305 = vlaneseq
          %v306 = vand.u32 %v305, 127
          %v307 = vld [vmem:[#allocation2] sm:$0xff]
          %v308 = vld [vmem:[#allocation2 + $0x8] sm:$0xff]
          %vm309 = vcmp.lt.s32.totalorder %v306, 16
          %v310 = vsel %vm309, %v303, 0.0
          %v311 = vsel %vm309, %v304, 0.0
          %v312 = vadd.f32 %v307, %v310
          %v313 = vadd.f32 %v308, %v311
          %314 = vst [vmem:[#allocation2] sm:$0xff] %v312
          %315 = vst [vmem:[#allocation2 + $0x8] sm:$0xff] %v313
          %v316 = vld [vmem:[#allocation2] sm:$0xff]
          %v317 = vld [vmem:[#allocation2 + $0x8] sm:$0xff]
          %318 = vadd.xlane.f32.xlu0 %v316
          %v319 = vpop.xlane.xlu0 %318
          %320 = vadd.xlane.f32.xlu0 %v317
          %v321 = vpop.xlane.xlu0 %320
          %v322 = vmul.f32 %v319, 0.0025
          %v323 = vmul.f32 %v321, 0.0025
          %v324 = vld [vmem:[%s1] sm:$0xff]
          %v327 = vlaneseq
          %v328 = vshrl.u32 %v327, 7
          %v329 = vsub.s32 %v306, %v328
          %v330 = vrot.slane %v322, %v329
          %v331 = vlaneseq
          %v332 = vshrl.u32 %v331, 7
          %v333 = vsub.s32 %v306, %v332
          %v334 = vrot.slane %v323, %v333
          %vm335 = vcmask 1041409
          %v336 = vsel %vm335, %v334, %v330
          %vm337 = vcmask 64512
          %v338 = vsel %vm337, %v336, 0
          %340 = vmatprep.subr.mxu0 0.0
          %341 = vmatpush1.msra.mxu0 %v324
          %342 = vmatprep.subr.mxu0 0.0
          %343 = vmatpush1.msra.mxu0 0.0
          %344 = vmatprep.subr.mxu0 0.0
          %345 = vmatpush1.msra.mxu0 0.0
          %346 = vmatprep.subr.mxu0 0.0
          %347 = vmatpush1.msra.mxu0 0.0
          %348 = vmatprep.subr.mxu0 0.0
          %349 = vmatpush1.msra.mxu0 0.0
          %350 = vmatprep.subr.mxu0 0.0
          %351 = vmatpush1.msra.mxu0 0.0
          %352 = vmatprep.subr.mxu0 0.0
          %353 = vmatpush1.msra.mxu0 0.0
          %354 = vmatprep.subr.mxu0 0.0
          %355 = vmatpush1.msra.mxu0 0.0
          %356 = vmatprep.subr.mxu0 0.0
          %357 = vmatpush1.msra.mxu0 0.0
          %358 = vmatprep.subr.mxu0 0.0
          %359 = vmatpush1.msra.mxu0 0.0
          %360 = vmatprep.subr.mxu0 0.0
          %361 = vmatpush1.msra.mxu0 0.0
          %362 = vmatprep.subr.mxu0 0.0
          %363 = vmatpush1.msra.mxu0 0.0
          %364 = vmatprep.subr.mxu0 0.0
          %365 = vmatpush1.msra.mxu0 0.0
          %366 = vmatprep.subr.mxu0 0.0
          %367 = vmatpush1.msra.mxu0 0.0
          %368 = vmatprep.subr.mxu0 0.0
          %369 = vmatpush1.msra.mxu0 0.0
          %370 = vmatprep.subr.mxu0 0.0
          %371 = vmatpush1.msra.mxu0 0.0
          %372 = vmatprep.subr.mxu0 0.0
          %373 = vmatpush1.msra.mxu0 0.0
          %374 = vmatprep.subr.mxu0 0.0
          %375 = vmatpush1.msra.mxu0 0.0
          %376 = vmatprep.subr.mxu0 0.0
          %377 = vmatpush1.msra.mxu0 0.0
          %378 = vmatprep.subr.mxu0 0.0
          %379 = vmatpush1.msra.mxu0 0.0
          %380 = vmatprep.subr.mxu0 0.0
          %381 = vmatpush1.msra.mxu0 0.0
          %382 = vmatprep.subr.mxu0 0.0
          %383 = vmatpush1.msra.mxu0 0.0
          %384 = vmatprep.subr.mxu0 0.0
          %385 = vmatpush1.msra.mxu0 0.0
          %386 = vmatprep.subr.mxu0 0.0
          %387 = vmatpush1.msra.mxu0 0.0
          %388 = vmatprep.subr.mxu0 0.0
          %389 = vmatpush1.msra.mxu0 0.0
          %390 = vmatprep.subr.mxu0 0.0
          %391 = vmatpush1.msra.mxu0 0.0
          %392 = vmatprep.subr.mxu0 0.0
          %393 = vmatpush1.msra.mxu0 0.0
          %394 = vmatprep.subr.mxu0 0.0
          %395 = vmatpush1.msra.mxu0 0.0
          %396 = vmatprep.subr.mxu0 0.0
          %397 = vmatpush1.msra.mxu0 0.0
          %398 = vmatprep.subr.mxu0 0.0
          %399 = vmatpush1.msra.mxu0 0.0
          %400 = vmatprep.subr.mxu0 0.0
          %401 = vmatpush1.msra.mxu0 0.0
          %402 = vmatprep.subr.mxu0 0.0
          %403 = vmatpush1.msra.mxu0 0.0
          %404 = vmatprep.mubr.f32.mxu0 0.0
          %405 = vmatmul.mubr.f32.gmra.mrb[0].mxu0 %v338
          %v406 = vpop.f32.mrb[0].mxu0
          %v407 = vadd.f32 0.0, %v406
          %v408 = vpop.f32.mrb[0].mxu0
          %409 = vdwg.mxu0
          %v410 = vmax.f32 %v407, 0.0
          %s411 = sld [smem:[#allocation3]]
          %v412 = vld [vmem:[%s2] sm:$0xff]
          %v413 = vld [vmem:[%s2 + $0x8] sm:$0xff]
          %v414 = vld [vmem:[%s3] sm:$0x1]
          %v416 = vlaneseq
          %v417 = vshrl.u32 %v416, 7
          %v418 = vsub.s32 0, %v417
          %v419 = vrot.slane %v414, %v418
          %vm421 = vcmask 130048
          %v423 = vsel %vm421, %v410, 0
          %425 = vmatprep.subr.mxu0 0.0
          %426 = vmatpush1.msra.mxu0 %v412
          %427 = vmatprep.subr.mxu0 0.0
          %428 = vmatpush1.msra.mxu0 %v413
          %429 = vmatprep.subr.mxu0 0.0
          %430 = vmatpush1.msra.mxu0 0.0
          %431 = vmatprep.subr.mxu0 0.0
          %432 = vmatpush1.msra.mxu0 0.0
          %433 = vmatprep.subr.mxu0 0.0
          %434 = vmatpush1.msra.mxu0 0.0
          %435 = vmatprep.subr.mxu0 0.0
          %436 = vmatpush1.msra.mxu0 0.0
          %437 = vmatprep.subr.mxu0 0.0
          %438 = vmatpush1.msra.mxu0 0.0
          %439 = vmatprep.subr.mxu0 0.0
          %440 = vmatpush1.msra.mxu0 0.0
          %441 = vmatprep.subr.mxu0 0.0
          %442 = vmatpush1.msra.mxu0 0.0
          %443 = vmatprep.subr.mxu0 0.0
          %444 = vmatpush1.msra.mxu0 0.0
          %445 = vmatprep.subr.mxu0 0.0
          %446 = vmatpush1.msra.mxu0 0.0
          %447 = vmatprep.subr.mxu0 0.0
          %448 = vmatpush1.msra.mxu0 0.0
          %449 = vmatprep.subr.mxu0 0.0
          %450 = vmatpush1.msra.mxu0 0.0
          %451 = vmatprep.subr.mxu0 0.0
          %452 = vmatpush1.msra.mxu0 0.0
          %453 = vmatprep.subr.mxu0 0.0
          %454 = vmatpush1.msra.mxu0 0.0
          %455 = vmatprep.subr.mxu0 0.0
          %456 = vmatpush1.msra.mxu0 0.0
          %457 = vmatprep.subr.mxu0 0.0
          %458 = vmatpush1.msra.mxu0 0.0
          %459 = vmatprep.subr.mxu0 0.0
          %460 = vmatpush1.msra.mxu0 0.0
          %461 = vmatprep.subr.mxu0 0.0
          %462 = vmatpush1.msra.mxu0 0.0
          %463 = vmatprep.subr.mxu0 0.0
          %464 = vmatpush1.msra.mxu0 0.0
          %465 = vmatprep.subr.mxu0 0.0
          %466 = vmatpush1.msra.mxu0 0.0
          %467 = vmatprep.subr.mxu0 0.0
          %468 = vmatpush1.msra.mxu0 0.0
          %469 = vmatprep.subr.mxu0 0.0
          %470 = vmatpush1.msra.mxu0 0.0
          %471 = vmatprep.subr.mxu0 0.0
          %472 = vmatpush1.msra.mxu0 0.0
          %473 = vmatprep.subr.mxu0 0.0
          %474 = vmatpush1.msra.mxu0 0.0
          %475 = vmatprep.subr.mxu0 0.0
          %476 = vmatpush1.msra.mxu0 0.0
          %477 = vmatprep.subr.mxu0 0.0
          %478 = vmatpush1.msra.mxu0 0.0
          %479 = vmatprep.subr.mxu0 0.0
          %480 = vmatpush1.msra.mxu0 0.0
          %481 = vmatprep.subr.mxu0 0.0
          %482 = vmatpush1.msra.mxu0 0.0
          %483 = vmatprep.subr.mxu0 0.0
          %484 = vmatpush1.msra.mxu0 0.0
          %485 = vmatprep.subr.mxu0 0.0
          %486 = vmatpush1.msra.mxu0 0.0
          %487 = vmatprep.subr.mxu0 0.0
          %488 = vmatpush1.msra.mxu0 0.0
          %489 = vmatprep.mubr.f32.mxu0 0.0
          %490 = vmatmul.mubr.f32.gmra.mrb[0].mxu0 %v423
          %v491 = vpop.f32.mrb[0].mxu0
          %v492 = vadd.f32 %v419, %v491
          %v493 = vpop.f32.mrb[0].mxu0
          %494 = vdwg.mxu0
          %v495 = vstv %s411
          %v496 = vrcp.pop %v495
          %v497 = vmul.f32 %v492, %v496
          %v498 = vxor.u32 %v497, 2147483648
          %v499 = vmul.f32 %v498, 1.442695
          %v500 = vpow.pop %v499
          %v501 = vadd.f32 %v500, 1.0
          %v502 = vrcp.pop %v501
          %v503 = vmul.f32 1.0, %v502
          %vm504 = vcmp.ge.s32.totalorder %v306, 33
          %vm505 = vcmp.lt.s32.totalorder %v306, 37
          %vm506 = vmand %vm504, %vm505
          %v507 = vsel %vm506, %v497, -inf
          %vm508 = vcmask 1041408
          %v509 = vsel %vm508, %v507, -inf
          %510 = vmax.xlane.f32.xlu0 %v509
          %v511 = vpop.xlane.xlu0 %510
          %v512 = vsub.f32 %v497, %v511
          %v513 = vsel %vm506, %v512, -inf
          %v514 = vmul.f32 %v513, 1.442695
          %v515 = vpow.pop %v514
          %v516 = vsel %vm508, %v515, 0.0
          %517 = vadd.xlane.f32.xlu0 %v516
          %v518 = vpop.xlane.xlu0 %517
          %v519 = vrcp.pop %v518
          %v520 = vmul.f32 %v515, %v519
          %v521 = vsel %vm506, %v520, %v503
          %v524 = vunpack.c.l.s4 1966171168
          %v525 = vunpack.c.0.s8 %v524
          %v526 = vlaneseq
          %v527 = vshrl.u32 %v526, 7
          %v528 = vsub.s32 %v525, %v527
          %v529 = vrot.slane %v521, %v528
          %v530 = vcombine.high %v529, %v529
          %v532 = vunpack.c.l.s4 1966171168
          %v533 = vunpack.c.0.s8 %v532
          %v534 = vlaneseq
          %v535 = vshrl.u32 %v534, 7
          %v536 = vsub.s32 %v533, %v535
          %v537 = vrot.slane %v529, %v536
          %v539 = vunpack.c.l.s4 1966171168
          %v540 = vunpack.c.0.s8 %v539
          %v541 = vlaneseq
          %v542 = vshrl.u32 %v541, 7
          %v543 = vsub.s32 %v540, %v542
          %v544 = vrot.slane %v530, %v543
          %547 = vst [vmem:[%s279] sm:$0x1] %v537
          %548 = vst [vmem:[%s279 + $0x1] sm:$0x1] %v544
        $region90: #{bottleneck_forward.1} parent=73 // pred_fallthru
          _
        %s549 = smul.u32 2, %s21
        %p550 = scmp.lt.s32.totalorder %s549, 3
        %s551 = scalar_select %p550, %s549, 3
        %s552 = scalar_lea.vmem %s5, %s551
        // Predicated region
        $region91: #{bottleneck_forward.1} parent=73 // pred_check
          %p553 = pneg %p159
        $region92: #{bottleneck_forward.1} parent=73 // pred_check_branch
          %555 = sbr.rel (%p553) target = $region94
        $region93: #{bottleneck_forward.1} parent=73 // pred_region
          %s556 = smul.u32 2, %s21
        $region94: #{bottleneck_forward.1} parent=73 // pred_fallthru
          _
      $region74: #{bottleneck_forward.1} parent=5 // pred_fallthru
        _
      %p557 = scmp.le.s32.totalorder 2, %s12
      // Predicated region
      $region95: #{bottleneck_forward.1} parent=5 // pred_check
        %p558 = pneg %p557
      $region96: #{bottleneck_forward.1} parent=5 // pred_check_branch
        %560 = sbr.rel (%p558) target = $region98
      $region97: #{bottleneck_forward.1} parent=5 // pred_region
        %s561 = ssub.s32 %s12, 2
        // Predicated region
        $region99: #{bottleneck_forward.1} parent=97 // pred_check
          %p562 = pneg %p165
        $region100: #{bottleneck_forward.1} parent=97 // pred_check_branch
          %564 = sbr.rel (%p562) target = $region102
        $region101: #{bottleneck_forward.1} parent=97 // pred_region
          %s565 = smul.u32 2, %s23
          %p566 = scmp.lt.s32.totalorder %s565, 3
          %s567 = scalar_select %p566, %s565, 3
          %s568 = scalar_lea.vmem %s5, %s567
        $region102: #{bottleneck_forward.1} parent=97 // pred_fallthru
          _
      $region98: #{bottleneck_forward.1} parent=5 // pred_fallthru
        _
    $region6: #{bottleneck_forward.1} parent=1 // loop_footer
      %s16 = sadd.s32 1, %s12
    $region7: #{bottleneck_forward.1} parent=1 // loop_footer_branch
      %11 = sbr.rel target = $region3
    $region8: #{bottleneck_forward.1} parent=1 // loop_exit
      _

</llo_original>
